<compile_context>
chip_gen: v7x
topology: tpu7x:2x2x1
jax: 0.10.0
libtpu: 0.0.40
codegen_flags: <defaults>
</compile_context>

<pallas_src>
import jax
import jax.numpy as jnp
from jax.experimental import pallas as pl
from jax.experimental.pallas import tpu as pltpu

LANE = 128
SUBLANE = 8
# Stay comfortably below the default scoped-VMEM limit on all chips.
VMEM_BUDGET_BYTES = 24 * 1024 * 1024


def _round_up(x, m):
    return ((x + m - 1) // m) * m


def actor_kernel(obs_ref, w1_ref, b1_ref, w2_ref, b2_ref, w3_ref, b3_ref,
                 mean_ref, scale_ref, out_ref):
    """One batch tile: mean + tanh(relu(relu(obs@W1+b1)@W2+b2)@W3+b3)*scale."""
    # hidden layer 1: ReLU(obs @ W1 + b1)   (bf16 MXU operands, f32 accum)
    h1 = jnp.dot(obs_ref[...].astype(jnp.bfloat16), w1_ref[...],
                 preferred_element_type=jnp.float32)
    h1 = jnp.maximum(h1 + b1_ref[...], 0.0)
    # hidden layer 2: ReLU(h1 @ W2 + b2)
    h2 = jnp.dot(h1.astype(jnp.bfloat16), w2_ref[...],
                 preferred_element_type=jnp.float32)
    h2 = jnp.maximum(h2 + b2_ref[...], 0.0)
    # output layer: Tanh(h2 @ W3 + b3) (tanh on EUP), then rescale (f32 VPU)
    z = jnp.dot(h2.astype(jnp.bfloat16), w3_ref[...],
                preferred_element_type=jnp.float32)
    a = jnp.tanh(z + b3_ref[...])
    out_ref[...] = mean_ref[...] + a * scale_ref[...]


def _pick_batch_tile(B, obs_dim, act_pad, resident_bytes, tile_b):
    """Largest 8-aligned batch tile <= tile_b whose footprint fits the budget."""
    tb = min(tile_b, _round_up(B, SUBLANE))
    tb = max(_round_up(tb, SUBLANE), SUBLANE)
    while tb > SUBLANE:
        # obs + out tiles are double-buffered by the Pallas pipeline.
        streaming = 2 * (tb * obs_dim * 4 + tb * act_pad * 4)
        if resident_bytes + streaming <= VMEM_BUDGET_BYTES:
            break
        tb -= SUBLANE
    return tb


def actor_forward(obs, params, *, tile_b=1024):
    """Fused Actor forward pass as a single batch-gridded Pallas kernel."""
    w1, b1, w2, b2, w3, b3, mean, scale = params
    B, obs_dim = obs.shape
    h1_dim = w1.shape[1]
    h2_dim = w2.shape[1]
    act_dim = w3.shape[1]

    # --- lane-dense output: pad action dim up to a multiple of 128 ---------
    act_pad = _round_up(act_dim, LANE)

    def pad_last(x):
        return jnp.pad(x, [(0, 0)] * (x.ndim - 1) + [(0, act_pad - x.shape[-1])])

    w3p, b3p = pad_last(w3), pad_last(b3)
    meanp, scalep = pad_last(mean), pad_last(scale)

    # --- bf16 MXU operands for the weights (activations cast in-kernel) ----
    w1b = w1.astype(jnp.bfloat16)
    w2b = w2.astype(jnp.bfloat16)
    w3b = w3p.astype(jnp.bfloat16)

    resident_bytes = ((w1b.size + w2b.size + w3b.size) * 2
                      + (b1.size + b2.size + b3p.size
                         + meanp.size + scalep.size) * 4)

    # --- batch tiling: tile is a multiple of 8 sublanes, batch padded so the
    #     grid divides exactly (padded rows are discarded on the way out) ---
    tb = _pick_batch_tile(B, obs_dim, act_pad, resident_bytes, tile_b)
    b_pad = _round_up(B, tb)
    obs_p = jnp.pad(obs, ((0, b_pad - B), (0, 0)))

    grid = (b_pad // tb,)

    def resident(arr):
        nd = arr.ndim
        return pl.BlockSpec(arr.shape, lambda i, _nd=nd: (0,) * _nd)

    # advisory cost estimate (3 matmuls + tanh head)
    flops = 2 * b_pad * (obs_dim * h1_dim + h1_dim * h2_dim + h2_dim * act_pad)
    bytes_accessed = (obs_p.size * 4 + b_pad * act_pad * 4 + resident_bytes)
    cost = pl.CostEstimate(flops=flops,
                           transcendentals=b_pad * act_pad,
                           bytes_accessed=bytes_accessed)

    out = pl.pallas_call(
        actor_kernel,
        out_shape=jax.ShapeDtypeStruct((b_pad, act_pad), jnp.float32),
        grid=grid,
        in_specs=[pl.BlockSpec((tb, obs_dim), lambda i: (i, 0)),
                  resident(w1b), resident(b1),
                  resident(w2b), resident(b2),
                  resident(w3b), resident(b3p),
                  resident(meanp), resident(scalep)],
        out_specs=pl.BlockSpec((tb, act_pad), lambda i: (i, 0)),
        compiler_params=pltpu.CompilerParams(
            dimension_semantics=("parallel",)),
        cost_estimate=cost,
    )(obs_p, w1b, b1, w2b, b2, w3b, b3p, meanp, scalep)

    return out[:B, :act_dim]


def make_params(key, obs_dim, hidden_sizes, act_dim, act_low, act_high):
    """Deterministic synthetic parameters for the Actor MLP (f32)."""
    sizes = [obs_dim] + list(hidden_sizes) + [act_dim]
    keys = jax.random.split(key, 2 * (len(sizes) - 1))
    params = []
    for i in range(len(sizes) - 1):
        fan_in, fan_out = sizes[i], sizes[i + 1]
        bound = 1.0 / jnp.sqrt(jnp.float32(fan_in))
        w = jax.random.uniform(keys[2 * i], (fan_in, fan_out),
                               minval=-bound, maxval=bound, dtype=jnp.float32)
        b = jax.random.uniform(keys[2 * i + 1], (1, fan_out),
                               minval=-bound, maxval=bound, dtype=jnp.float32)
        params.extend([w, b])
    half = (act_high - act_low) * 0.5
    mean = (act_low + half).reshape(1, act_dim).astype(jnp.float32)
    scale = half.reshape(1, act_dim).astype(jnp.float32)
    params.extend([mean, scale])
    return tuple(params)


def actor_reference(obs, params):
    """Pure-JAX f32 reference for correctness checking."""
    w1, b1, w2, b2, w3, b3, mean, scale = params
    h1 = jnp.maximum(obs @ w1 + b1, 0.0)
    h2 = jnp.maximum(h1 @ w2 + b2, 0.0)
    a = jnp.tanh(h2 @ w3 + b3)
    return mean + a * scale


if __name__ == "__main__":
    key = jax.random.PRNGKey(0)
    k_obs, k_params = jax.random.split(key)

    B, obs_dim, act_dim = 4, 16, 8
    hidden_sizes = [32, 32]

    # deterministic action limits: actions in [-2, 2] per dim
    act_low = -2.0 * jnp.ones((act_dim,), dtype=jnp.float32)
    act_high = 2.0 * jnp.ones((act_dim,), dtype=jnp.float32)

    obs = jax.random.normal(k_obs, (B, obs_dim), dtype=jnp.float32)
    params = make_params(k_params, obs_dim, hidden_sizes, act_dim,
                         act_low, act_high)

    out = actor_forward(obs, params)
    out = jax.block_until_ready(out)

    ref = actor_reference(obs, params)
    assert out.shape == (B, act_dim)
    # bf16 MXU operands => loosened tolerance vs. the f32 reference.
    assert jnp.allclose(out, ref, atol=5e-2, rtol=5e-2)

    print("KERNEL_OK")
</pallas_src>

<mosaic_0001>
module attributes {stable_mosaic.version = 11 : i64} {
  func.func @actor_kernel(%arg0: i32, %arg1: memref<8x16xf32, #tpu.memory_space<vmem>>, %arg2: memref<16x32xbf16, #tpu.memory_space<vmem>>, %arg3: memref<1x32xf32, #tpu.memory_space<vmem>>, %arg4: memref<32x32xbf16, #tpu.memory_space<vmem>>, %arg5: memref<1x32xf32, #tpu.memory_space<vmem>>, %arg6: memref<32x128xbf16, #tpu.memory_space<vmem>>, %arg7: memref<1x128xf32, #tpu.memory_space<vmem>>, %arg8: memref<1x128xf32, #tpu.memory_space<vmem>>, %arg9: memref<1x128xf32, #tpu.memory_space<vmem>>, %arg10: memref<8x128xf32, #tpu.memory_space<vmem>>) attributes {dimension_semantics = [#tpu.dimension_semantics<parallel>], iteration_bounds = array<i64: 1>, scalar_prefetch = 0 : i64, scratch_operands = 0 : i64, tpu.core_type = #tpu.core_type<tc>, window_params = [{transform_indices = @transform_0, window_bounds = array<i64: 8, 16>}, {pipeline_mode = #tpu.pipeline_mode<synchronous>, transform_indices = @transform_1, window_bounds = array<i64: 16, 32>}, {pipeline_mode = #tpu.pipeline_mode<synchronous>, transform_indices = @transform_2, window_bounds = array<i64: 1, 32>}, {pipeline_mode = #tpu.pipeline_mode<synchronous>, transform_indices = @transform_3, window_bounds = array<i64: 32, 32>}, {pipeline_mode = #tpu.pipeline_mode<synchronous>, transform_indices = @transform_4, window_bounds = array<i64: 1, 32>}, {pipeline_mode = #tpu.pipeline_mode<synchronous>, transform_indices = @transform_5, window_bounds = array<i64: 32, 128>}, {pipeline_mode = #tpu.pipeline_mode<synchronous>, transform_indices = @transform_6, window_bounds = array<i64: 1, 128>}, {pipeline_mode = #tpu.pipeline_mode<synchronous>, transform_indices = @transform_7, window_bounds = array<i64: 1, 128>}, {pipeline_mode = #tpu.pipeline_mode<synchronous>, transform_indices = @transform_8, window_bounds = array<i64: 1, 128>}, {transform_indices = @transform_9, window_bounds = array<i64: 8, 128>}]} {
    %c0 = arith.constant 0 : index
    %c0_0 = arith.constant 0 : index
    %0 = vector.load %arg1[%c0, %c0_0] : memref<8x16xf32, #tpu.memory_space<vmem>>, vector<8x16xf32>
    %1 = arith.truncf %0 : vector<8x16xf32> to vector<8x16xbf16>
    %c0_1 = arith.constant 0 : index
    %c0_2 = arith.constant 0 : index
    %2 = vector.load %arg2[%c0_1, %c0_2] : memref<16x32xbf16, #tpu.memory_space<vmem>>, vector<16x32xbf16>
    %cst = arith.constant dense<0.000000e+00> : vector<8x32xf32>
    %3 = tpu.matmul %1, %2, %cst {dimension_numbers = #tpu.dot_dimension_numbers<[1], [0], [0], [1], [0, 0, 1, 1], [], []>} : vector<8x16xbf16>, vector<16x32xbf16>, vector<8x32xf32> -> vector<8x32xf32>
    %c0_3 = arith.constant 0 : index
    %c0_4 = arith.constant 0 : index
    %4 = vector.load %arg3[%c0_3, %c0_4] : memref<1x32xf32, #tpu.memory_space<vmem>>, vector<1x32xf32>
    %5 = vector.broadcast %4 : vector<1x32xf32> to vector<8x32xf32>
    %6 = arith.addf %3, %5 : vector<8x32xf32>
    %cst_5 = arith.constant 0.000000e+00 : f32
    %7 = vector.broadcast %cst_5 : f32 to vector<8x32xf32>
    %8 = arith.maximumf %6, %7 : vector<8x32xf32>
    %9 = arith.truncf %8 : vector<8x32xf32> to vector<8x32xbf16>
    %c0_6 = arith.constant 0 : index
    %c0_7 = arith.constant 0 : index
    %10 = vector.load %arg4[%c0_6, %c0_7] : memref<32x32xbf16, #tpu.memory_space<vmem>>, vector<32x32xbf16>
    %cst_8 = arith.constant dense<0.000000e+00> : vector<8x32xf32>
    %11 = tpu.matmul %9, %10, %cst_8 {dimension_numbers = #tpu.dot_dimension_numbers<[1], [0], [0], [1], [0, 0, 1, 1], [], []>} : vector<8x32xbf16>, vector<32x32xbf16>, vector<8x32xf32> -> vector<8x32xf32>
    %c0_9 = arith.constant 0 : index
    %c0_10 = arith.constant 0 : index
    %12 = vector.load %arg5[%c0_9, %c0_10] : memref<1x32xf32, #tpu.memory_space<vmem>>, vector<1x32xf32>
    %13 = vector.broadcast %12 : vector<1x32xf32> to vector<8x32xf32>
    %14 = arith.addf %11, %13 : vector<8x32xf32>
    %cst_11 = arith.constant 0.000000e+00 : f32
    %15 = vector.broadcast %cst_11 : f32 to vector<8x32xf32>
    %16 = arith.maximumf %14, %15 : vector<8x32xf32>
    %17 = arith.truncf %16 : vector<8x32xf32> to vector<8x32xbf16>
    %c0_12 = arith.constant 0 : index
    %c0_13 = arith.constant 0 : index
    %18 = vector.load %arg6[%c0_12, %c0_13] : memref<32x128xbf16, #tpu.memory_space<vmem>>, vector<32x128xbf16>
    %cst_14 = arith.constant dense<0.000000e+00> : vector<8x128xf32>
    %19 = tpu.matmul %17, %18, %cst_14 {dimension_numbers = #tpu.dot_dimension_numbers<[1], [0], [0], [1], [0, 0, 1, 1], [], []>} : vector<8x32xbf16>, vector<32x128xbf16>, vector<8x128xf32> -> vector<8x128xf32>
    %c0_15 = arith.constant 0 : index
    %c0_16 = arith.constant 0 : index
    %20 = vector.load %arg7[%c0_15, %c0_16] : memref<1x128xf32, #tpu.memory_space<vmem>>, vector<1x128xf32>
    %21 = vector.broadcast %20 : vector<1x128xf32> to vector<8x128xf32>
    %22 = arith.addf %19, %21 : vector<8x128xf32>
    %23 = math.tanh %22 : vector<8x128xf32>
    %c0_17 = arith.constant 0 : index
    %c0_18 = arith.constant 0 : index
    %24 = vector.load %arg8[%c0_17, %c0_18] : memref<1x128xf32, #tpu.memory_space<vmem>>, vector<1x128xf32>
    %c0_19 = arith.constant 0 : index
    %c0_20 = arith.constant 0 : index
    %25 = vector.load %arg9[%c0_19, %c0_20] : memref<1x128xf32, #tpu.memory_space<vmem>>, vector<1x128xf32>
    %26 = vector.broadcast %25 : vector<1x128xf32> to vector<8x128xf32>
    %27 = arith.mulf %23, %26 : vector<8x128xf32>
    %28 = vector.broadcast %24 : vector<1x128xf32> to vector<8x128xf32>
    %29 = arith.addf %28, %27 : vector<8x128xf32>
    %c0_21 = arith.constant 0 : index
    %c0_22 = arith.constant 0 : index
    %30 = vector.load %arg10[%c0_21, %c0_22] : memref<8x128xf32, #tpu.memory_space<vmem>>, vector<8x128xf32>
    tpu.vector_store %arg10[%c0_21, %c0_22], %29 {strides = array<i32>} : memref<8x128xf32, #tpu.memory_space<vmem>>, vector<8x128xf32>,
    return
  }
  func.func @transform_0(%arg0: i32) -> (i32, i32) {
    %c0_i32 = arith.constant 0 : i32
    %c0_i32_0 = arith.constant 0 : i32
    return %arg0, %c0_i32 : i32, i32
  }
  func.func @transform_1(%arg0: i32) -> (i32, i32) {
    %c0_i32 = arith.constant 0 : i32
    %c0_i32_0 = arith.constant 0 : i32
    %c0_i32_1 = arith.constant 0 : i32
    return %c0_i32, %c0_i32_0 : i32, i32
  }
  func.func @transform_2(%arg0: i32) -> (i32, i32) {
    %c0_i32 = arith.constant 0 : i32
    %c0_i32_0 = arith.constant 0 : i32
    %c0_i32_1 = arith.constant 0 : i32
    return %c0_i32, %c0_i32_0 : i32, i32
  }
  func.func @transform_3(%arg0: i32) -> (i32, i32) {
    %c0_i32 = arith.constant 0 : i32
    %c0_i32_0 = arith.constant 0 : i32
    %c0_i32_1 = arith.constant 0 : i32
    return %c0_i32, %c0_i32_0 : i32, i32
  }
  func.func @transform_4(%arg0: i32) -> (i32, i32) {
    %c0_i32 = arith.constant 0 : i32
    %c0_i32_0 = arith.constant 0 : i32
    %c0_i32_1 = arith.constant 0 : i32
    return %c0_i32, %c0_i32_0 : i32, i32
  }
  func.func @transform_5(%arg0: i32) -> (i32, i32) {
    %c0_i32 = arith.constant 0 : i32
    %c0_i32_0 = arith.constant 0 : i32
    %c0_i32_1 = arith.constant 0 : i32
    return %c0_i32, %c0_i32_0 : i32, i32
  }
  func.func @transform_6(%arg0: i32) -> (i32, i32) {
    %c0_i32 = arith.constant 0 : i32
    %c0_i32_0 = arith.constant 0 : i32
    %c0_i32_1 = arith.constant 0 : i32
    return %c0_i32, %c0_i32_0 : i32, i32
  }
  func.func @transform_7(%arg0: i32) -> (i32, i32) {
    %c0_i32 = arith.constant 0 : i32
    %c0_i32_0 = arith.constant 0 : i32
    %c0_i32_1 = arith.constant 0 : i32
    return %c0_i32, %c0_i32_0 : i32, i32
  }
  func.func @transform_8(%arg0: i32) -> (i32, i32) {
    %c0_i32 = arith.constant 0 : i32
    %c0_i32_0 = arith.constant 0 : i32
    %c0_i32_1 = arith.constant 0 : i32
    return %c0_i32, %c0_i32_0 : i32, i32
  }
  func.func @transform_9(%arg0: i32) -> (i32, i32) {
    %c0_i32 = arith.constant 0 : i32
    %c0_i32_0 = arith.constant 0 : i32
    return %arg0, %c0_i32 : i32, i32
  }
}

</mosaic_0001>

<llo_original>
// kernel: tpu_custom_call.1
$region0: #{tpu_custom_call.1}
  #allocation0 [shape = 'u32[]', space=smem, size = 0x4, offset = 0x4, fixed_abs, tag = 'smem constant byte address 0x4 - core index']
  #allocation1 [shape = 'u32[144,128]{1,0:T(1,128)}', space=vmem, size = 0x12000, scoped, tag = 'internal scratch']
  %s0 = inlined_call_operand.hbm [shape: f32[8,16], index: 0, kind: input, shape index: {}]
  %s1 = inlined_call_operand.hbm [shape: bf16[16,32], index: 1, kind: input, shape index: {}]
  %s2 = inlined_call_operand.vmem [shape: f32[1,32], index: 2, kind: input, shape index: {}]
  %s3 = inlined_call_operand.hbm [shape: bf16[32,32], index: 3, kind: input, shape index: {}]
  %s4 = inlined_call_operand.vmem [shape: f32[1,32], index: 4, kind: input, shape index: {}]
  %s5 = inlined_call_operand.vmem [shape: bf16[32,128], index: 5, kind: input, shape index: {}]
  %s6 = inlined_call_operand.vmem [shape: f32[1,128], index: 6, kind: input, shape index: {}]
  %s7 = inlined_call_operand.vmem [shape: f32[1,128], index: 7, kind: input, shape index: {}]
  %s8 = inlined_call_operand.vmem [shape: f32[1,128], index: 8, kind: input, shape index: {}]
  %s9 = inlined_call_operand.hbm [shape: f32[8,128], index: 9, kind: output, shape index: {}]
  %s10 = sld [smem:[#allocation0]]
  $region58: #{tpu_custom_call.1} parent=0
    _
  %s12 = ssub.s32 1, %s10
  %s13 = scalar_select 0, %s12, %s10
  $region1: #{tpu_custom_call.1} parent=0
    #allocation2 [shape = 'u8[4096]{0}', space=vmem, size = 0x1000, scoped, tag = 'input window, operand 0, single buffered']
    #allocation3 [shape = 's32[1]{0}', space=sflag, size = 0x4, scoped, tag = 'scoped memory for tpu_custom_call.1']
    #allocation4 [shape = 's32[1]{0}', space=sflag, size = 0x4, scoped, tag = 'scoped memory for tpu_custom_call.1']
    #allocation5 [shape = 'u8[4096]{0}', space=vmem, size = 0x1000, scoped, tag = 'input window, operand 1, single buffered']
    #allocation6 [shape = 's32[1]{0}', space=sflag, size = 0x4, scoped, tag = 'scoped memory for tpu_custom_call.1']
    #allocation7 [shape = 'u8[8192]{0}', space=vmem, size = 0x2000, scoped, tag = 'input window, operand 3, single buffered']
    #allocation8 [shape = 'u8[4096]{0}', space=vmem, size = 0x1000, scoped, tag = 'output window, operand 0, single buffered']
    %14 = vsyncpa [#allocation3], 0
    %15 = vsyncpa [#allocation6], 0
    %16 = vsyncpa [#allocation4], 0
    // Predicated region
    $region2: #{tpu_custom_call.1} parent=1 // pred_check
      _
    $region3: #{tpu_custom_call.1} parent=1 // pred_check_branch
      %18 = sbr.rel (0) target = $region5
    $region4: #{tpu_custom_call.1} parent=1 // pred_region
      %s20 = ssub.s32 128, 128
      %21 = vsyncadd [#allocation3], %s20
      %s23 = sshll.u32 [#allocation2], 4
      %s24 = int_to_ptr.vmem [resolvable:$true] %s23
      %26 = dma.hbm_to_vmem [thread:$0]  %s0, 128, %s24, [#allocation3]
    $region5: #{tpu_custom_call.1} parent=1 // pred_fallthru
      _
    // Predicated region
    $region6: #{tpu_custom_call.1} parent=1 // pred_check
      _
    $region7: #{tpu_custom_call.1} parent=1 // pred_check_branch
      %28 = sbr.rel (0) target = $region9
    $region8: #{tpu_custom_call.1} parent=1 // pred_region
      %s30 = ssub.s32 128, 128
      %31 = vsyncadd [#allocation6], %s30
      %s32 = sshll.u32 [#allocation5], 4
      %s33 = int_to_ptr.vmem [resolvable:$true] %s32
      %38 = dma.hbm_to_vmem [thread:$0]  %s1, 128, %s33, [#allocation6], 64, 64, 4
    $region9: #{tpu_custom_call.1} parent=1 // pred_fallthru
      _
    // Predicated region
    $region10: #{tpu_custom_call.1} parent=1 // pred_check
      _
    $region11: #{tpu_custom_call.1} parent=1 // pred_check_branch
      %40 = sbr.rel (0) target = $region13
    $region12: #{tpu_custom_call.1} parent=1 // pred_region
      _
    $region13: #{tpu_custom_call.1} parent=1 // pred_fallthru
      _
    // Predicated region
    $region14: #{tpu_custom_call.1} parent=1 // pred_check
      _
    $region15: #{tpu_custom_call.1} parent=1 // pred_check_branch
      %42 = sbr.rel (0) target = $region17
    $region16: #{tpu_custom_call.1} parent=1 // pred_region
      %s44 = ssub.s32 256, 256
      %45 = vsyncadd [#allocation6], %s44
      %s46 = sshll.u32 [#allocation7], 4
      %s47 = int_to_ptr.vmem [resolvable:$true] %s46
      %52 = dma.hbm_to_vmem [thread:$0]  %s3, 256, %s47, [#allocation6], 64, 64, 4
    $region17: #{tpu_custom_call.1} parent=1 // pred_fallthru
      _
    // Predicated region
    $region18: #{tpu_custom_call.1} parent=1 // pred_check
      _
    $region19: #{tpu_custom_call.1} parent=1 // pred_check_branch
      %54 = sbr.rel (0) target = $region21
    $region20: #{tpu_custom_call.1} parent=1 // pred_region
      _
    $region21: #{tpu_custom_call.1} parent=1 // pred_fallthru
      _
    // Predicated region
    $region22: #{tpu_custom_call.1} parent=1 // pred_check
      _
    $region23: #{tpu_custom_call.1} parent=1 // pred_check_branch
      %56 = sbr.rel (0) target = $region25
    $region24: #{tpu_custom_call.1} parent=1 // pred_region
      _
    $region25: #{tpu_custom_call.1} parent=1 // pred_fallthru
      _
    // Predicated region
    $region26: #{tpu_custom_call.1} parent=1 // pred_check
      _
    $region27: #{tpu_custom_call.1} parent=1 // pred_check_branch
      %58 = sbr.rel (0) target = $region29
    $region28: #{tpu_custom_call.1} parent=1 // pred_region
      _
    $region29: #{tpu_custom_call.1} parent=1 // pred_fallthru
      _
    // Predicated region
    $region30: #{tpu_custom_call.1} parent=1 // pred_check
      _
    $region31: #{tpu_custom_call.1} parent=1 // pred_check_branch
      %60 = sbr.rel (0) target = $region33
    $region32: #{tpu_custom_call.1} parent=1 // pred_region
      _
    $region33: #{tpu_custom_call.1} parent=1 // pred_fallthru
      _
    // Predicated region
    $region34: #{tpu_custom_call.1} parent=1 // pred_check
      _
    $region35: #{tpu_custom_call.1} parent=1 // pred_check_branch
      %62 = sbr.rel (0) target = $region37
    $region36: #{tpu_custom_call.1} parent=1 // pred_region
      _
    $region37: #{tpu_custom_call.1} parent=1 // pred_fallthru
      _
    // Predicated region
    $region38: #{tpu_custom_call.1} parent=1 // pred_check
      _
    $region39: #{tpu_custom_call.1} parent=1 // pred_check_branch
      %64 = sbr.rel (0) target = $region41
    $region40: #{tpu_custom_call.1} parent=1 // pred_region
      %65 = dma.done [#allocation3], 128
    $region41: #{tpu_custom_call.1} parent=1 // pred_fallthru
      _
    // Predicated region
    $region42: #{tpu_custom_call.1} parent=1 // pred_check
      _
    $region43: #{tpu_custom_call.1} parent=1 // pred_check_branch
      %67 = sbr.rel (0) target = $region45
    $region44: #{tpu_custom_call.1} parent=1 // pred_region
      %68 = dma.done [#allocation6], 128
    $region45: #{tpu_custom_call.1} parent=1 // pred_fallthru
      _
    // Predicated region
    $region46: #{tpu_custom_call.1} parent=1 // pred_check
      _
    $region47: #{tpu_custom_call.1} parent=1 // pred_check_branch
      %70 = sbr.rel (0) target = $region49
    $region48: #{tpu_custom_call.1} parent=1 // pred_region
      %71 = dma.done [#allocation6], 256
    $region49: #{tpu_custom_call.1} parent=1 // pred_fallthru
      _
    %v73 = vld [vmem:[#allocation2] sm:$0xff]
    %v74 = vpack.c.bf16 %v73, %v73
    %v75 = vld [vmem:[#allocation5] sm:$0xf]
    %v76 = vld [vmem:[#allocation5 + $0x4] sm:$0xf]
    %v77 = vld [vmem:[%s2] sm:$0x1]
    %v79 = vlaneseq
    %v80 = vshrl.u32 %v79, 7
    %v81 = vsub.s32 0, %v80
    %v82 = vrot.slane %v77, %v81
    %v86 = vunpack.c.l.b16 %v75
    %v87 = vunpack.c.l.b16 %v76
    %v88 = vpack.c.b16 %v87, %v86
    %vm90 = vcmask 130048
    %v92 = vsel %vm90, %v74, 0
    %94 = vmatprep.subr.bf16.mxu0 0
    %95 = vmatpush1.bf16.msra.mxu0 %v88
    %96 = vmatprep.subr.bf16.mxu0 0
    %97 = vmatpush1.bf16.msra.mxu0 0
    %98 = vmatprep.subr.bf16.mxu0 0
    %99 = vmatpush1.bf16.msra.mxu0 0
    %100 = vmatprep.subr.bf16.mxu0 0
    %101 = vmatpush1.bf16.msra.mxu0 0
    %102 = vmatprep.subr.bf16.mxu0 0
    %103 = vmatpush1.bf16.msra.mxu0 0
    %104 = vmatprep.subr.bf16.mxu0 0
    %105 = vmatpush1.bf16.msra.mxu0 0
    %106 = vmatprep.subr.bf16.mxu0 0
    %107 = vmatpush1.bf16.msra.mxu0 0
    %108 = vmatprep.subr.bf16.mxu0 0
    %109 = vmatpush1.bf16.msra.mxu0 0
    %110 = vmatprep.subr.bf16.mxu0 0
    %111 = vmatpush1.bf16.msra.mxu0 0
    %112 = vmatprep.subr.bf16.mxu0 0
    %113 = vmatpush1.bf16.msra.mxu0 0
    %114 = vmatprep.subr.bf16.mxu0 0
    %115 = vmatpush1.bf16.msra.mxu0 0
    %116 = vmatprep.subr.bf16.mxu0 0
    %117 = vmatpush1.bf16.msra.mxu0 0
    %118 = vmatprep.subr.bf16.mxu0 0
    %119 = vmatpush1.bf16.msra.mxu0 0
    %120 = vmatprep.subr.bf16.mxu0 0
    %121 = vmatpush1.bf16.msra.mxu0 0
    %122 = vmatprep.subr.bf16.mxu0 0
    %123 = vmatpush1.bf16.msra.mxu0 0
    %124 = vmatprep.subr.bf16.mxu0 0
    %125 = vmatpush1.bf16.msra.mxu0 0
    %126 = vmatprep.mubr.bf16.mxu0 0
    %127 = vmatmul.mubr.bf16.gmra.mrb[0].mxu0 %v92
    %v128 = vpop.f32.mrb[0].mxu0
    %v129 = vadd.f32 %v82, %v128
    %v130 = vpop.f32.mrb[0].mxu0
    %v131 = vpop.f32.mrb[0].mxu0
    %v132 = vpop.f32.mrb[0].mxu0
    %133 = vdwg.mxu0
    %v134 = vmax.f32 %v129, 0.0
    %v135 = vpack.c.bf16 %v134, %v134
    %v136 = vld [vmem:[#allocation7] sm:$0xf]
    %v137 = vld [vmem:[#allocation7 + $0x4] sm:$0xf]
    %v138 = vld [vmem:[#allocation7 + $0x8] sm:$0xf]
    %v139 = vld [vmem:[#allocation7 + $0xc] sm:$0xf]
    %v140 = vld [vmem:[%s4] sm:$0x1]
    %v142 = vlaneseq
    %v143 = vshrl.u32 %v142, 7
    %v144 = vsub.s32 0, %v143
    %v145 = vrot.slane %v140, %v144
    %v151 = vunpack.c.l.b16 %v136
    %v152 = vunpack.c.l.b16 %v137
    %v153 = vunpack.c.l.b16 %v138
    %v154 = vunpack.c.l.b16 %v139
    %v155 = vpack.c.b16 %v152, %v151
    %v156 = vpack.c.b16 %v154, %v153
    %vm159 = vcmask 261120
    %v161 = vsel %vm159, %v135, 0
    %163 = vmatprep.subr.bf16.mxu0 0
    %164 = vmatpush1.bf16.msra.mxu0 %v155
    %165 = vmatprep.subr.bf16.mxu0 0
    %166 = vmatpush1.bf16.msra.mxu0 %v156
    %167 = vmatprep.subr.bf16.mxu0 0
    %168 = vmatpush1.bf16.msra.mxu0 0
    %169 = vmatprep.subr.bf16.mxu0 0
    %170 = vmatpush1.bf16.msra.mxu0 0
    %171 = vmatprep.subr.bf16.mxu0 0
    %172 = vmatpush1.bf16.msra.mxu0 0
    %173 = vmatprep.subr.bf16.mxu0 0
    %174 = vmatpush1.bf16.msra.mxu0 0
    %175 = vmatprep.subr.bf16.mxu0 0
    %176 = vmatpush1.bf16.msra.mxu0 0
    %177 = vmatprep.subr.bf16.mxu0 0
    %178 = vmatpush1.bf16.msra.mxu0 0
    %179 = vmatprep.subr.bf16.mxu0 0
    %180 = vmatpush1.bf16.msra.mxu0 0
    %181 = vmatprep.subr.bf16.mxu0 0
    %182 = vmatpush1.bf16.msra.mxu0 0
    %183 = vmatprep.subr.bf16.mxu0 0
    %184 = vmatpush1.bf16.msra.mxu0 0
    %185 = vmatprep.subr.bf16.mxu0 0
    %186 = vmatpush1.bf16.msra.mxu0 0
    %187 = vmatprep.subr.bf16.mxu0 0
    %188 = vmatpush1.bf16.msra.mxu0 0
    %189 = vmatprep.subr.bf16.mxu0 0
    %190 = vmatpush1.bf16.msra.mxu0 0
    %191 = vmatprep.subr.bf16.mxu0 0
    %192 = vmatpush1.bf16.msra.mxu0 0
    %193 = vmatprep.subr.bf16.mxu0 0
    %194 = vmatpush1.bf16.msra.mxu0 0
    %195 = vmatprep.mubr.bf16.mxu0 0
    %196 = vmatmul.mubr.bf16.gmra.mrb[0].mxu0 %v161
    %v197 = vpop.f32.mrb[0].mxu0
    %v198 = vadd.f32 %v145, %v197
    %v199 = vpop.f32.mrb[0].mxu0
    %v200 = vpop.f32.mrb[0].mxu0
    %v201 = vpop.f32.mrb[0].mxu0
    %202 = vdwg.mxu0
    %v203 = vmax.f32 %v198, 0.0
    %v204 = vpack.c.bf16 %v203, %v203
    %v205 = vld [vmem:[%s5] sm:$0xf]
    %v206 = vld [vmem:[%s5 + $0x4] sm:$0xf]
    %v207 = vld [vmem:[%s5 + $0x8] sm:$0xf]
    %v208 = vld [vmem:[%s5 + $0xc] sm:$0xf]
    %v209 = vld [vmem:[%s6] sm:$0x1]
    %v211 = vlaneseq
    %v212 = vshrl.u32 %v211, 7
    %v213 = vsub.s32 0, %v212
    %v214 = vrot.slane %v209, %v213
    %v220 = vunpack.c.l.b16 %v205
    %v221 = vunpack.c.l.b16 %v206
    %v222 = vunpack.c.l.b16 %v207
    %v223 = vunpack.c.l.b16 %v208
    %v224 = vpack.c.b16 %v221, %v220
    %v225 = vpack.c.b16 %v223, %v222
    %v229 = vsel %vm159, %v204, 0
    %231 = vmatprep.subr.bf16.mxu0 0
    %232 = vmatpush1.bf16.msra.mxu0 %v224
    %233 = vmatprep.subr.bf16.mxu0 0
    %234 = vmatpush1.bf16.msra.mxu0 %v225
    %235 = vmatprep.subr.bf16.mxu0 0
    %236 = vmatpush1.bf16.msra.mxu0 0
    %237 = vmatprep.subr.bf16.mxu0 0
    %238 = vmatpush1.bf16.msra.mxu0 0
    %239 = vmatprep.subr.bf16.mxu0 0
    %240 = vmatpush1.bf16.msra.mxu0 0
    %241 = vmatprep.subr.bf16.mxu0 0
    %242 = vmatpush1.bf16.msra.mxu0 0
    %243 = vmatprep.subr.bf16.mxu0 0
    %244 = vmatpush1.bf16.msra.mxu0 0
    %245 = vmatprep.subr.bf16.mxu0 0
    %246 = vmatpush1.bf16.msra.mxu0 0
    %247 = vmatprep.subr.bf16.mxu0 0
    %248 = vmatpush1.bf16.msra.mxu0 0
    %249 = vmatprep.subr.bf16.mxu0 0
    %250 = vmatpush1.bf16.msra.mxu0 0
    %251 = vmatprep.subr.bf16.mxu0 0
    %252 = vmatpush1.bf16.msra.mxu0 0
    %253 = vmatprep.subr.bf16.mxu0 0
    %254 = vmatpush1.bf16.msra.mxu0 0
    %255 = vmatprep.subr.bf16.mxu0 0
    %256 = vmatpush1.bf16.msra.mxu0 0
    %257 = vmatprep.subr.bf16.mxu0 0
    %258 = vmatpush1.bf16.msra.mxu0 0
    %259 = vmatprep.subr.bf16.mxu0 0
    %260 = vmatpush1.bf16.msra.mxu0 0
    %261 = vmatprep.subr.bf16.mxu0 0
    %262 = vmatpush1.bf16.msra.mxu0 0
    %263 = vmatprep.mubr.bf16.mxu0 0
    %264 = vmatmul.mubr.bf16.gmra.mrb[0].mxu0 %v229
    %v265 = vpop.f32.mrb[0].mxu0
    %v266 = vadd.f32 %v214, %v265
    %v267 = vpop.f32.mrb[0].mxu0
    %v268 = vpop.f32.mrb[0].mxu0
    %v269 = vpop.f32.mrb[0].mxu0
    %270 = vdwg.mxu0
    %v271 = vtanh.pop %v266
    %v272 = vld [vmem:[%s7] sm:$0x1]
    %v273 = vld [vmem:[%s8] sm:$0x1]
    %v275 = vlaneseq
    %v276 = vshrl.u32 %v275, 7
    %v277 = vsub.s32 0, %v276
    %v278 = vrot.slane %v273, %v277
    %v280 = vmul.f32 %v271, %v278
    %v282 = vlaneseq
    %v283 = vshrl.u32 %v282, 7
    %v284 = vsub.s32 0, %v283
    %v285 = vrot.slane %v272, %v284
    %v287 = vadd.f32 %v285, %v280
    %288 = vst [vmem:[#allocation8] sm:$0xff] %v287
    // Predicated region
    $region50: #{tpu_custom_call.1} parent=1 // pred_check
      _
    $region51: #{tpu_custom_call.1} parent=1 // pred_check_branch
      %290 = sbr.rel (0) target = $region53
    $region52: #{tpu_custom_call.1} parent=1 // pred_region
      %s292 = ssub.s32 128, 128
      %293 = vsyncadd [#allocation4], %s292
      %s295 = sshll.u32 [#allocation8], 4
      %s296 = int_to_ptr.vmem [resolvable:$true] %s295
      %298 = dma.vmem_to_hbm [thread:$0]  %s296, 128, %s9, [#allocation4]
    $region53: #{tpu_custom_call.1} parent=1 // pred_fallthru
      _
    // Predicated region
    $region54: #{tpu_custom_call.1} parent=1 // pred_check
      _
    $region55: #{tpu_custom_call.1} parent=1 // pred_check_branch
      %300 = sbr.rel (0) target = $region57
    $region56: #{tpu_custom_call.1} parent=1 // pred_region
      %301 = dma.done [#allocation4], 128
    $region57: #{tpu_custom_call.1} parent=1 // pred_fallthru
      _
    %302 = vsyncpa [#allocation3], 1
    %303 = vsyncpa [#allocation6], 1
    %304 = vsyncpa [#allocation4], 1

</llo_original>
